<compile_context>
chip_gen: v7x
topology: tpu7x:2x2x1
jax: 0.10.0
libtpu: 0.0.40
codegen_flags: <defaults>
</compile_context>

<pallas_src>
from functools import partial

import jax
import jax.numpy as jnp
from jax import lax
from jax.experimental import pallas as pl
from jax.experimental.pallas import tpu as pltpu


def _round_up(x, m):
    return (x + m - 1) // m * m


# ----------------------------- Pallas kernel ------------------------------ #
def _mlp_kernel(idx_ref, *refs, n_fc, num_users, num_items):
    """One batch tile of the fused NCF MLP (batch on lanes, gather fused).

    idx_ref : int32 [2, tile_b]   row 0 = user ids, row 1 = item ids
    refs = (w1u_emb, w1i_emb, b1, w2, b2, ..., w_nfc, b_nfc, w_out_col, b_out, out)
      w1u_emb : bf16 [out1, num_users]   (fc1 user-half folded into user table)
      w1i_emb : bf16 [out1, num_items]   (fc1 item-half folded into item table)
      w_l     : bf16 [out_l, in_l]       (torch [out, in] layout)
      b_l     : f32  [out_l, 1]
      w_out   : f32  [d_last, 1]
      b_out   : f32  [1, 1]
      out     : f32  [1, tile_b]         (lane-dense logits slab)
    """
    out_ref = refs[-1]
    prefs = refs[:-1]

    idx = idx_ref[...]                                   # int32 [2, tile_b]
    tb = idx.shape[1]

    w1u = prefs[0][...]                                  # bf16 [out1, num_users]
    w1i = prefs[1][...]                                  # bf16 [out1, num_items]
    b1 = prefs[2][...]                                   # f32  [out1, 1]

    # Fused gather + layer 1: one-hot columns (exact 0/1 in bf16) hit the
    # idle MXU; since fc1 is pre-folded into the tables, the gathered
    # embeddings are never materialized.
    # TODO(synk): for large vocabularies replace the one-hot matmul with a
    # manual DMA gather (tables in pl.ANY + scalar-prefetched indices).
    iota_u = lax.broadcasted_iota(jnp.int32, (num_users, tb), 0)
    iota_i = lax.broadcasted_iota(jnp.int32, (num_items, tb), 0)
    oh_u = (iota_u == idx[0:1, :]).astype(w1u.dtype)     # bf16 [num_users, tb]
    oh_i = (iota_i == idx[1:2, :]).astype(w1i.dtype)     # bf16 [num_items, tb]
    v = (jnp.dot(w1u, oh_u, preferred_element_type=jnp.float32)
         + jnp.dot(w1i, oh_i, preferred_element_type=jnp.float32)
         + b1)
    v = jnp.maximum(v, 0.0)                              # ReLU in f32 (v5e VPU)

    # Remaining hidden layers: MXU matmul (bf16 in, f32 acc) + bias + ReLU.
    for l in range(1, n_fc):
        w = prefs[1 + 2 * l][...]
        b = prefs[2 + 2 * l][...]
        v = jnp.dot(w, v.astype(w.dtype), preferred_element_type=jnp.float32) + b
        v = jnp.maximum(v, 0.0)

    # Affine output: broadcast-mul + sublane reduce (XLU slot) instead of a
    # degenerate M=1 MXU matmul; result stays lane-dense [1, tile_b].
    w_out = prefs[-2][...]                               # [d_last, 1]
    b_out = prefs[-1][...]                               # [1, 1]
    logits = jnp.sum(v * w_out, axis=0, keepdims=True) + b_out
    out_ref[...] = jax.nn.sigmoid(logits)


# ------------------------------- Wrapper ----------------------------------- #
def mlp_forward(user_indices, item_indices, params, *, tile_b_max=8192):
    """Reproduces MLP.forward(user_indices, item_indices) -> rating [B, 1]."""
    emb_u_t = params["emb_user_t"]                       # f32 [latent, num_users]
    emb_i_t = params["emb_item_t"]                       # f32 [latent, num_items]
    latent, num_users = emb_u_t.shape
    _, num_items = emb_i_t.shape
    fc = params["fc"]
    n_fc = len(fc)

    B = int(user_indices.shape[0])
    # Lane-dense batch tile; keep >= 2 grid steps when B allows it so v7x's
    # second TensorCore gets work under dimension_semantics=("parallel",).
    b128 = _round_up(max(B, 1), 128)
    tile_b = max(128, min(tile_b_max, _round_up((b128 + 1) // 2, 128)))
    b_pad = _round_up(B, tile_b)
    num_tiles = b_pad // tile_b

    # Single int32 [2, b_pad] index slab: the only batch-sized kernel input.
    pad = b_pad - B
    idx = jnp.stack(
        [jnp.pad(user_indices.astype(jnp.int32), (0, pad)),
         jnp.pad(item_indices.astype(jnp.int32), (0, pad))], axis=0)

    # Fold fc1 into the embedding tables (associativity of matmul):
    #   W1 @ cat(Eu[u], Ei[i]) == (W1[:, :L] @ Eu)[:, u] + (W1[:, L:] @ Ei)[:, i]
    # Tiny [out1, vocab] matrices, computed once per call in f32, stored bf16.
    w1, b1 = fc[0]
    w1u_emb = (w1[:, :latent] @ emb_u_t).astype(jnp.bfloat16)   # [out1, num_users]
    w1i_emb = (w1[:, latent:] @ emb_i_t).astype(jnp.bfloat16)   # [out1, num_items]
    flat = [w1u_emb, w1i_emb, b1.reshape(-1, 1).astype(jnp.float32)]
    for (w, b) in fc[1:]:
        flat += [w.astype(jnp.bfloat16), b.reshape(-1, 1).astype(jnp.float32)]
    flat += [params["out_w"].reshape(-1, 1).astype(jnp.float32),   # [d_last, 1]
             params["out_b"].reshape(1, 1).astype(jnp.float32)]    # [1, 1]

    def _resident(a):
        # VMEM-resident: constant index_map => same block every grid step, so
        # Pallas does not re-DMA it per step.
        # TODO(synk): mark pipeline_mode=pl.Buffered(1) once verified on all
        # target generations to also drop the (tiny) second buffer.
        return pl.BlockSpec(a.shape, lambda i, nd=a.ndim: (0,) * nd)

    # Advisory cost model for XLA's scheduler around the custom call.
    out1 = fc[0][0].shape[0]
    d_last = fc[-1][0].shape[0]
    flops = 2 * b_pad * (out1 * (num_users + num_items)
                         + sum(w.shape[0] * w.shape[1] for (w, _) in fc[1:])
                         + d_last)
    bytes_accessed = (idx.size * 4 + b_pad * 4
                      + sum(int(a.size) * a.dtype.itemsize for a in flat))
    cost = pl.CostEstimate(flops=int(flops), transcendentals=int(b_pad),
                           bytes_accessed=int(bytes_accessed))

    out = pl.pallas_call(
        partial(_mlp_kernel, n_fc=n_fc, num_users=num_users, num_items=num_items),
        out_shape=jax.ShapeDtypeStruct((1, b_pad), jnp.float32),
        grid_spec=pltpu.PrefetchScalarGridSpec(
            num_scalar_prefetch=0,
            grid=(num_tiles,),
            in_specs=[pl.BlockSpec((2, tile_b), lambda i: (0, i))]
                     + [_resident(a) for a in flat],
            out_specs=pl.BlockSpec((1, tile_b), lambda i: (0, i)),
        ),
        compiler_params=pltpu.CompilerParams(
            dimension_semantics=("parallel",),          # megacore on v7x
            vmem_limit_bytes=32 * 1024 * 1024,          # safe on v5e/v6e/v7x
        ),
        cost_estimate=cost,
    )(idx, *flat)

    return out[0, :B].reshape(B, 1)


# --------------------------- Parameter creation ----------------------------- #
def init_params(key, num_users, num_items, latent_dim, layers):
    assert layers[0] == 2 * latent_dim, "layers[0] must equal 2 * latent_dim"
    keys = jax.random.split(key, 4 + 2 * len(layers))
    k_it = iter(keys)

    params = {
        # torch.nn.Embedding default init: N(0, 1).  Stored transposed
        # ([latent, num_rows]); lookup semantics unchanged.
        "emb_user_t": jax.random.normal(next(k_it), (latent_dim, num_users), jnp.float32),
        "emb_item_t": jax.random.normal(next(k_it), (latent_dim, num_items), jnp.float32),
        "fc": [],
    }
    # torch.nn.Linear default init: U(-1/sqrt(in), 1/sqrt(in)); weight [out, in].
    for in_size, out_size in zip(layers[:-1], layers[1:]):
        bound = 1.0 / (in_size ** 0.5)
        w = jax.random.uniform(next(k_it), (out_size, in_size), jnp.float32, -bound, bound)
        b = jax.random.uniform(next(k_it), (out_size,), jnp.float32, -bound, bound)
        params["fc"].append((w, b))

    bound = 1.0 / (layers[-1] ** 0.5)
    params["out_w"] = jax.random.uniform(next(k_it), (1, layers[-1]), jnp.float32, -bound, bound)
    params["out_b"] = jax.random.uniform(next(k_it), (1,), jnp.float32, -bound, bound)
    return params


# ------------------------------ References ---------------------------------- #
def ref_forward_kernel_dtypes(user_idx, item_idx, params):
    """Mirrors the kernel's math (folded fc1 stored in bf16, bf16 matmul
    inputs, f32 accumulation) for a tight-tolerance check."""
    latent = params["emb_user_t"].shape[0]
    w1, b1 = params["fc"][0]
    w1u = (w1[:, :latent] @ params["emb_user_t"]).astype(jnp.bfloat16).astype(jnp.float32)
    w1i = (w1[:, latent:] @ params["emb_item_t"]).astype(jnp.bfloat16).astype(jnp.float32)
    v = w1u[:, user_idx] + w1i[:, item_idx] + b1[:, None]          # [out1, B]
    v = jnp.maximum(v, 0.0)
    for (w, b) in params["fc"][1:]:
        v = jnp.dot(w.astype(jnp.bfloat16), v.astype(jnp.bfloat16),
                    preferred_element_type=jnp.float32) + b[:, None]
        v = jnp.maximum(v, 0.0)
    logits = (jnp.sum(v * params["out_w"].reshape(-1, 1), axis=0, keepdims=True)
              + params["out_b"].reshape(1, 1))
    return jax.nn.sigmoid(logits).T                                 # [B, 1]


def ref_forward_f32(user_idx, item_idx, params):
    """PyTorch-faithful f32 reference."""
    u = params["emb_user_t"].T[user_idx]                            # [B, latent]
    it = params["emb_item_t"].T[item_idx]
    v = jnp.concatenate([u, it], axis=-1)
    for (w, b) in params["fc"]:
        v = jnp.maximum(v @ w.T + b[None, :], 0.0)
    logits = v @ params["out_w"].T + params["out_b"][None, :]
    return jax.nn.sigmoid(logits)


# --------------------------------- Main ------------------------------------ #
if __name__ == "__main__":
    # Small synthetic config implied by the module's __init__.
    num_users, num_items = 32, 48
    latent_dim = 8
    layers = [16, 32, 16, 8]      # layers[0] == 2 * latent_dim
    key = jax.random.PRNGKey(0)
    k_param, k_u, k_i, k_u2, k_i2 = jax.random.split(key, 5)

    params = init_params(k_param, num_users, num_items, latent_dim, layers)

    # Case 1: tiny batch (single grid step).
    batch = 8
    user_idx = jax.random.randint(k_u, (batch,), 0, num_users, dtype=jnp.int32)
    item_idx = jax.random.randint(k_i, (batch,), 0, num_items, dtype=jnp.int32)

    rating = mlp_forward(user_idx, item_idx, params)
    rating = jax.block_until_ready(rating)
    assert rating.shape == (batch, 1)
    assert jnp.allclose(rating, ref_forward_kernel_dtypes(user_idx, item_idx, params),
                        atol=1e-4, rtol=1e-4)
    assert jnp.allclose(rating, ref_forward_f32(user_idx, item_idx, params),
                        atol=5e-2, rtol=5e-2)

    # Case 2: ragged batch exercising padding and the >=2-step parallel grid.
    batch2 = 300
    user_idx2 = jax.random.randint(k_u2, (batch2,), 0, num_users, dtype=jnp.int32)
    item_idx2 = jax.random.randint(k_i2, (batch2,), 0, num_items, dtype=jnp.int32)

    rating2 = mlp_forward(user_idx2, item_idx2, params)
    rating2 = jax.block_until_ready(rating2)
    assert rating2.shape == (batch2, 1)
    assert jnp.allclose(rating2, ref_forward_kernel_dtypes(user_idx2, item_idx2, params),
                        atol=1e-4, rtol=1e-4)
    assert jnp.allclose(rating2, ref_forward_f32(user_idx2, item_idx2, params),
                        atol=5e-2, rtol=5e-2)

    print("KERNEL_OK")
</pallas_src>

<mosaic_0001>
module attributes {stable_mosaic.version = 11 : i64} {
  func.func @_mlp_kernel(%arg0: i32, %arg1: memref<2x128xi32, #tpu.memory_space<vmem>>, %arg2: memref<32x32xbf16, #tpu.memory_space<vmem>>, %arg3: memref<32x48xbf16, #tpu.memory_space<vmem>>, %arg4: memref<32x1xf32, #tpu.memory_space<vmem>>, %arg5: memref<16x32xbf16, #tpu.memory_space<vmem>>, %arg6: memref<16x1xf32, #tpu.memory_space<vmem>>, %arg7: memref<8x16xbf16, #tpu.memory_space<vmem>>, %arg8: memref<8x1xf32, #tpu.memory_space<vmem>>, %arg9: memref<8x1xf32, #tpu.memory_space<vmem>>, %arg10: memref<1x1xf32, #tpu.memory_space<vmem>>, %arg11: memref<1x128xf32, #tpu.memory_space<vmem>>) attributes {dimension_semantics = [#tpu.dimension_semantics<parallel>], iteration_bounds = array<i64: 1>, scalar_prefetch = 0 : i64, scratch_operands = 0 : i64, tpu.core_type = #tpu.core_type<tc>, window_params = [{transform_indices = @transform_0, window_bounds = array<i64: 2, 128>}, {pipeline_mode = #tpu.pipeline_mode<synchronous>, transform_indices = @transform_1, window_bounds = array<i64: 32, 32>}, {pipeline_mode = #tpu.pipeline_mode<synchronous>, transform_indices = @transform_2, window_bounds = array<i64: 32, 48>}, {pipeline_mode = #tpu.pipeline_mode<synchronous>, transform_indices = @transform_3, window_bounds = array<i64: 32, 1>}, {pipeline_mode = #tpu.pipeline_mode<synchronous>, transform_indices = @transform_4, window_bounds = array<i64: 16, 32>}, {pipeline_mode = #tpu.pipeline_mode<synchronous>, transform_indices = @transform_5, window_bounds = array<i64: 16, 1>}, {pipeline_mode = #tpu.pipeline_mode<synchronous>, transform_indices = @transform_6, window_bounds = array<i64: 8, 16>}, {pipeline_mode = #tpu.pipeline_mode<synchronous>, transform_indices = @transform_7, window_bounds = array<i64: 8, 1>}, {pipeline_mode = #tpu.pipeline_mode<synchronous>, transform_indices = @transform_8, window_bounds = array<i64: 8, 1>}, {pipeline_mode = #tpu.pipeline_mode<synchronous>, transform_indices = @transform_9, window_bounds = array<i64: 1, 1>}, {transform_indices = @transform_10, window_bounds = array<i64: 1, 128>}]} {
    %c0 = arith.constant 0 : index
    %c0_0 = arith.constant 0 : index
    %0 = vector.load %arg1[%c0, %c0_0] : memref<2x128xi32, #tpu.memory_space<vmem>>, vector<2x128xi32>
    %c0_1 = arith.constant 0 : index
    %c0_2 = arith.constant 0 : index
    %1 = vector.load %arg2[%c0_1, %c0_2] : memref<32x32xbf16, #tpu.memory_space<vmem>>, vector<32x32xbf16>
    %c0_3 = arith.constant 0 : index
    %c0_4 = arith.constant 0 : index
    %2 = vector.load %arg3[%c0_3, %c0_4] : memref<32x48xbf16, #tpu.memory_space<vmem>>, vector<32x48xbf16>
    %c0_5 = arith.constant 0 : index
    %c0_6 = arith.constant 0 : index
    %3 = vector.load %arg4[%c0_5, %c0_6] : memref<32x1xf32, #tpu.memory_space<vmem>>, vector<32x1xf32>
    %4 = tpu.iota {dimensions = array<i32: 0>} : vector<32x128xi32>
    %5 = tpu.iota {dimensions = array<i32: 0>} : vector<48x128xi32>
    %6 = vector.extract_strided_slice %0 {offsets = [0, 0], sizes = [1, 128], strides = [1, 1]} : vector<2x128xi32> to vector<1x128xi32>
    %7 = vector.broadcast %6 : vector<1x128xi32> to vector<32x128xi32>
    %8 = arith.cmpi eq, %4, %7 : vector<32x128xi32>
    %9 = arith.extui %8 : vector<32x128xi1> to vector<32x128xi32>
    %10 = arith.sitofp %9 : vector<32x128xi32> to vector<32x128xf32>
    %11 = arith.truncf %10 : vector<32x128xf32> to vector<32x128xbf16>
    %12 = vector.extract_strided_slice %0 {offsets = [1, 0], sizes = [1, 128], strides = [1, 1]} : vector<2x128xi32> to vector<1x128xi32>
    %13 = vector.broadcast %12 : vector<1x128xi32> to vector<48x128xi32>
    %14 = arith.cmpi eq, %5, %13 : vector<48x128xi32>
    %15 = arith.extui %14 : vector<48x128xi1> to vector<48x128xi32>
    %16 = arith.sitofp %15 : vector<48x128xi32> to vector<48x128xf32>
    %17 = arith.truncf %16 : vector<48x128xf32> to vector<48x128xbf16>
    %cst = arith.constant dense<0.000000e+00> : vector<32x128xf32>
    %18 = tpu.matmul %1, %11, %cst {dimension_numbers = #tpu.dot_dimension_numbers<[1], [0], [0], [1], [0, 0, 1, 1], [], []>} : vector<32x32xbf16>, vector<32x128xbf16>, vector<32x128xf32> -> vector<32x128xf32>
    %cst_7 = arith.constant dense<0.000000e+00> : vector<32x128xf32>
    %19 = tpu.matmul %2, %17, %cst_7 {dimension_numbers = #tpu.dot_dimension_numbers<[1], [0], [0], [1], [0, 0, 1, 1], [], []>} : vector<32x48xbf16>, vector<48x128xbf16>, vector<32x128xf32> -> vector<32x128xf32>
    %20 = arith.addf %18, %19 : vector<32x128xf32>
    %21 = vector.broadcast %3 : vector<32x1xf32> to vector<32x128xf32>
    %22 = arith.addf %20, %21 : vector<32x128xf32>
    %cst_8 = arith.constant 0.000000e+00 : f32
    %23 = vector.broadcast %cst_8 : f32 to vector<32x128xf32>
    %24 = arith.maximumf %22, %23 : vector<32x128xf32>
    %c0_9 = arith.constant 0 : index
    %c0_10 = arith.constant 0 : index
    %25 = vector.load %arg5[%c0_9, %c0_10] : memref<16x32xbf16, #tpu.memory_space<vmem>>, vector<16x32xbf16>
    %c0_11 = arith.constant 0 : index
    %c0_12 = arith.constant 0 : index
    %26 = vector.load %arg6[%c0_11, %c0_12] : memref<16x1xf32, #tpu.memory_space<vmem>>, vector<16x1xf32>
    %27 = arith.truncf %24 : vector<32x128xf32> to vector<32x128xbf16>
    %cst_13 = arith.constant dense<0.000000e+00> : vector<16x128xf32>
    %28 = tpu.matmul %25, %27, %cst_13 {dimension_numbers = #tpu.dot_dimension_numbers<[1], [0], [0], [1], [0, 0, 1, 1], [], []>} : vector<16x32xbf16>, vector<32x128xbf16>, vector<16x128xf32> -> vector<16x128xf32>
    %29 = vector.broadcast %26 : vector<16x1xf32> to vector<16x128xf32>
    %30 = arith.addf %28, %29 : vector<16x128xf32>
    %cst_14 = arith.constant 0.000000e+00 : f32
    %31 = vector.broadcast %cst_14 : f32 to vector<16x128xf32>
    %32 = arith.maximumf %30, %31 : vector<16x128xf32>
    %c0_15 = arith.constant 0 : index
    %c0_16 = arith.constant 0 : index
    %33 = vector.load %arg7[%c0_15, %c0_16] : memref<8x16xbf16, #tpu.memory_space<vmem>>, vector<8x16xbf16>
    %c0_17 = arith.constant 0 : index
    %c0_18 = arith.constant 0 : index
    %34 = vector.load %arg8[%c0_17, %c0_18] : memref<8x1xf32, #tpu.memory_space<vmem>>, vector<8x1xf32>
    %35 = arith.truncf %32 : vector<16x128xf32> to vector<16x128xbf16>
    %cst_19 = arith.constant dense<0.000000e+00> : vector<8x128xf32>
    %36 = tpu.matmul %33, %35, %cst_19 {dimension_numbers = #tpu.dot_dimension_numbers<[1], [0], [0], [1], [0, 0, 1, 1], [], []>} : vector<8x16xbf16>, vector<16x128xbf16>, vector<8x128xf32> -> vector<8x128xf32>
    %37 = vector.broadcast %34 : vector<8x1xf32> to vector<8x128xf32>
    %38 = arith.addf %36, %37 : vector<8x128xf32>
    %cst_20 = arith.constant 0.000000e+00 : f32
    %39 = vector.broadcast %cst_20 : f32 to vector<8x128xf32>
    %40 = arith.maximumf %38, %39 : vector<8x128xf32>
    %c0_21 = arith.constant 0 : index
    %c0_22 = arith.constant 0 : index
    %41 = vector.load %arg9[%c0_21, %c0_22] : memref<8x1xf32, #tpu.memory_space<vmem>>, vector<8x1xf32>
    %c0_23 = arith.constant 0 : index
    %c0_24 = arith.constant 0 : index
    %42 = vector.load %arg10[%c0_23, %c0_24] : memref<1x1xf32, #tpu.memory_space<vmem>>, vector<1x1xf32>
    %43 = vector.broadcast %41 : vector<8x1xf32> to vector<8x128xf32>
    %44 = arith.mulf %40, %43 : vector<8x128xf32>
    %cst_25 = arith.constant dense<0.000000e+00> : vector<128xf32>
    %45 = vector.multi_reduction <add>, %44, %cst_25 [0] : vector<8x128xf32> to vector<128xf32>
    %46 = vector.shape_cast %45 : vector<128xf32> to vector<1x128xf32>
    %47 = vector.broadcast %42 : vector<1x1xf32> to vector<1x128xf32>
    %48 = arith.addf %46, %47 : vector<1x128xf32>
    %49 = arith.negf %48 : vector<1x128xf32>
    %50 = math.exp %49 : vector<1x128xf32>
    %cst_26 = arith.constant 1.000000e+00 : f32
    %51 = vector.broadcast %cst_26 : f32 to vector<1x128xf32>
    %52 = arith.addf %51, %50 : vector<1x128xf32>
    %53 = arith.divf %51, %52 : vector<1x128xf32>
    %c0_27 = arith.constant 0 : index
    %c0_28 = arith.constant 0 : index
    %54 = vector.load %arg11[%c0_27, %c0_28] : memref<1x128xf32, #tpu.memory_space<vmem>>, vector<1x128xf32>
    tpu.vector_store %arg11[%c0_27, %c0_28], %53 {strides = array<i32>} : memref<1x128xf32, #tpu.memory_space<vmem>>, vector<1x128xf32>,
    return
  }
  func.func @transform_0(%arg0: i32) -> (i32, i32) {
    %c0_i32 = arith.constant 0 : i32
    %c0_i32_0 = arith.constant 0 : i32
    return %c0_i32, %arg0 : i32, i32
  }
  func.func @transform_1(%arg0: i32) -> (i32, i32) {
    %c0_i32 = arith.constant 0 : i32
    %c0_i32_0 = arith.constant 0 : i32
    %c0_i32_1 = arith.constant 0 : i32
    return %c0_i32, %c0_i32_0 : i32, i32
  }
  func.func @transform_2(%arg0: i32) -> (i32, i32) {
    %c0_i32 = arith.constant 0 : i32
    %c0_i32_0 = arith.constant 0 : i32
    %c0_i32_1 = arith.constant 0 : i32
    return %c0_i32, %c0_i32_0 : i32, i32
  }
  func.func @transform_3(%arg0: i32) -> (i32, i32) {
    %c0_i32 = arith.constant 0 : i32
    %c0_i32_0 = arith.constant 0 : i32
    %c0_i32_1 = arith.constant 0 : i32
    return %c0_i32, %c0_i32_0 : i32, i32
  }
  func.func @transform_4(%arg0: i32) -> (i32, i32) {
    %c0_i32 = arith.constant 0 : i32
    %c0_i32_0 = arith.constant 0 : i32
    %c0_i32_1 = arith.constant 0 : i32
    return %c0_i32, %c0_i32_0 : i32, i32
  }
  func.func @transform_5(%arg0: i32) -> (i32, i32) {
    %c0_i32 = arith.constant 0 : i32
    %c0_i32_0 = arith.constant 0 : i32
    %c0_i32_1 = arith.constant 0 : i32
    return %c0_i32, %c0_i32_0 : i32, i32
  }
  func.func @transform_6(%arg0: i32) -> (i32, i32) {
    %c0_i32 = arith.constant 0 : i32
    %c0_i32_0 = arith.constant 0 : i32
    %c0_i32_1 = arith.constant 0 : i32
    return %c0_i32, %c0_i32_0 : i32, i32
  }
  func.func @transform_7(%arg0: i32) -> (i32, i32) {
    %c0_i32 = arith.constant 0 : i32
    %c0_i32_0 = arith.constant 0 : i32
    %c0_i32_1 = arith.constant 0 : i32
    return %c0_i32, %c0_i32_0 : i32, i32
  }
  func.func @transform_8(%arg0: i32) -> (i32, i32) {
    %c0_i32 = arith.constant 0 : i32
    %c0_i32_0 = arith.constant 0 : i32
    %c0_i32_1 = arith.constant 0 : i32
    return %c0_i32, %c0_i32_0 : i32, i32
  }
  func.func @transform_9(%arg0: i32) -> (i32, i32) {
    %c0_i32 = arith.constant 0 : i32
    %c0_i32_0 = arith.constant 0 : i32
    %c0_i32_1 = arith.constant 0 : i32
    return %c0_i32, %c0_i32_0 : i32, i32
  }
  func.func @transform_10(%arg0: i32) -> (i32, i32) {
    %c0_i32 = arith.constant 0 : i32
    %c0_i32_0 = arith.constant 0 : i32
    return %c0_i32, %arg0 : i32, i32
  }
}

</mosaic_0001>

<llo_original>
// kernel: tpu_custom_call.1
$region0: #{tpu_custom_call.1}
  #allocation0 [shape = 'u32[]', space=smem, size = 0x4, offset = 0x4, fixed_abs, tag = 'smem constant byte address 0x4 - core index']
  #allocation1 [shape = 'u32[144,128]{1,0:T(1,128)}', space=vmem, size = 0x12000, scoped, tag = 'internal scratch']
  #allocation2 [shape = 'f32[1,1]{1,0:T(1,128)S(1)}', space=vmem, size = 0x200, scoped, tag = 'scoped memory for tpu_custom_call.1']
  %s0 = inlined_call_operand.vmem [shape: s32[2,128], index: 0, kind: input, shape index: {}]
  %s1 = inlined_call_operand.vmem [shape: bf16[32,32], index: 1, kind: input, shape index: {}]
  %s2 = inlined_call_operand.vmem [shape: bf16[32,48], index: 2, kind: input, shape index: {}]
  %s3 = inlined_call_operand.vmem [shape: f32[32,1], index: 3, kind: input, shape index: {}]
  %s4 = inlined_call_operand.vmem [shape: bf16[16,32], index: 4, kind: input, shape index: {}]
  %s5 = inlined_call_operand.vmem [shape: f32[16,1], index: 5, kind: input, shape index: {}]
  %s6 = inlined_call_operand.vmem [shape: bf16[8,16], index: 6, kind: input, shape index: {}]
  %s7 = inlined_call_operand.vmem [shape: f32[8,1], index: 7, kind: input, shape index: {}]
  %s8 = inlined_call_operand.vmem [shape: f32[8,1], index: 8, kind: input, shape index: {}]
  %s9 = inlined_call_operand.<no memory space> [shape: f32[1,1], index: 9, kind: input, shape index: {}]
  %s10 = inlined_call_operand.hbm [shape: f32[1,128], index: 10, kind: output, shape index: {}]
  %s11 = sld [smem:[#allocation0]]
  $region50: #{tpu_custom_call.1} parent=0
    _
  %s13 = ssub.s32 1, %s11
  %s14 = scalar_select 0, %s13, %s11
  %v15 = vstv %s9
  %16 = vst [vmem:[#allocation2] sm:$0x1] %v15
  $region1: #{tpu_custom_call.1} parent=0
    #allocation3 [shape = 'u8[512]{0}', space=vmem, size = 0x400, scoped, tag = 'output window, operand 0, single buffered']
    #allocation4 [shape = 's32[1]{0}', space=sflag, size = 0x4, scoped, tag = 'scoped memory for tpu_custom_call.1']
    %17 = vsyncpa [#allocation4], 0
    // Predicated region
    $region2: #{tpu_custom_call.1} parent=1 // pred_check
      _
    $region3: #{tpu_custom_call.1} parent=1 // pred_check_branch
      %19 = sbr.rel (0) target = $region5
    $region4: #{tpu_custom_call.1} parent=1 // pred_region
      _
    $region5: #{tpu_custom_call.1} parent=1 // pred_fallthru
      _
    // Predicated region
    $region6: #{tpu_custom_call.1} parent=1 // pred_check
      _
    $region7: #{tpu_custom_call.1} parent=1 // pred_check_branch
      %21 = sbr.rel (0) target = $region9
    $region8: #{tpu_custom_call.1} parent=1 // pred_region
      _
    $region9: #{tpu_custom_call.1} parent=1 // pred_fallthru
      _
    // Predicated region
    $region10: #{tpu_custom_call.1} parent=1 // pred_check
      _
    $region11: #{tpu_custom_call.1} parent=1 // pred_check_branch
      %23 = sbr.rel (0) target = $region13
    $region12: #{tpu_custom_call.1} parent=1 // pred_region
      _
    $region13: #{tpu_custom_call.1} parent=1 // pred_fallthru
      _
    // Predicated region
    $region14: #{tpu_custom_call.1} parent=1 // pred_check
      _
    $region15: #{tpu_custom_call.1} parent=1 // pred_check_branch
      %25 = sbr.rel (0) target = $region17
    $region16: #{tpu_custom_call.1} parent=1 // pred_region
      _
    $region17: #{tpu_custom_call.1} parent=1 // pred_fallthru
      _
    // Predicated region
    $region18: #{tpu_custom_call.1} parent=1 // pred_check
      _
    $region19: #{tpu_custom_call.1} parent=1 // pred_check_branch
      %27 = sbr.rel (0) target = $region21
    $region20: #{tpu_custom_call.1} parent=1 // pred_region
      _
    $region21: #{tpu_custom_call.1} parent=1 // pred_fallthru
      _
    // Predicated region
    $region22: #{tpu_custom_call.1} parent=1 // pred_check
      _
    $region23: #{tpu_custom_call.1} parent=1 // pred_check_branch
      %29 = sbr.rel (0) target = $region25
    $region24: #{tpu_custom_call.1} parent=1 // pred_region
      _
    $region25: #{tpu_custom_call.1} parent=1 // pred_fallthru
      _
    // Predicated region
    $region26: #{tpu_custom_call.1} parent=1 // pred_check
      _
    $region27: #{tpu_custom_call.1} parent=1 // pred_check_branch
      %31 = sbr.rel (0) target = $region29
    $region28: #{tpu_custom_call.1} parent=1 // pred_region
      _
    $region29: #{tpu_custom_call.1} parent=1 // pred_fallthru
      _
    // Predicated region
    $region30: #{tpu_custom_call.1} parent=1 // pred_check
      _
    $region31: #{tpu_custom_call.1} parent=1 // pred_check_branch
      %33 = sbr.rel (0) target = $region33
    $region32: #{tpu_custom_call.1} parent=1 // pred_region
      _
    $region33: #{tpu_custom_call.1} parent=1 // pred_fallthru
      _
    // Predicated region
    $region34: #{tpu_custom_call.1} parent=1 // pred_check
      _
    $region35: #{tpu_custom_call.1} parent=1 // pred_check_branch
      %35 = sbr.rel (0) target = $region37
    $region36: #{tpu_custom_call.1} parent=1 // pred_region
      _
    $region37: #{tpu_custom_call.1} parent=1 // pred_fallthru
      _
    // Predicated region
    $region38: #{tpu_custom_call.1} parent=1 // pred_check
      _
    $region39: #{tpu_custom_call.1} parent=1 // pred_check_branch
      %37 = sbr.rel (0) target = $region41
    $region40: #{tpu_custom_call.1} parent=1 // pred_region
      _
    $region41: #{tpu_custom_call.1} parent=1 // pred_fallthru
      _
    %v39 = vld [vmem:[%s0] sm:$0x3]
    %v40 = vld [vmem:[%s1] sm:$0xf]
    %v41 = vld [vmem:[%s1 + $0x4] sm:$0xf]
    %v42 = vld [vmem:[%s1 + $0x8] sm:$0xf]
    %v43 = vld [vmem:[%s1 + $0xc] sm:$0xf]
    %v44 = vld [vmem:[%s2] sm:$0xf]
    %v45 = vld [vmem:[%s2 + $0x4] sm:$0xf]
    %v46 = vld [vmem:[%s2 + $0x8] sm:$0xf]
    %v47 = vld [vmem:[%s2 + $0xc] sm:$0xf]
    %v48 = vld [vmem:[%s3] sm:$0xff]
    %v49 = vld [vmem:[%s3 + $0x8] sm:$0xff]
    %v50 = vld [vmem:[%s3 + $0x10] sm:$0xff]
    %v51 = vld [vmem:[%s3 + $0x18] sm:$0xff]
    %v52 = vlaneseq
    %v53 = vshrl.u32 %v52, 7
    %v54 = vadd.s32 %v53, 8
    %v55 = vadd.s32 %v53, 16
    %v56 = vadd.s32 %v53, 24
    %v57 = vadd.s32 %v53, 32
    %v58 = vadd.s32 %v53, 40
    %v59 = vlaneseq
    %v60 = vshrl.u32 %v59, 7
    %v61 = vsub.s32 0, %v60
    %v62 = vrot.slane %v39, %v61
    %vm63 = vcmp.eq.s32.totalorder %v53, %v62
    %vm64 = vcmp.eq.s32.totalorder %v54, %v62
    %vm65 = vcmp.eq.s32.totalorder %v55, %v62
    %vm66 = vcmp.eq.s32.totalorder %v56, %v62
    %v67 = vsel %vm63, 1, 0
    %v68 = vsel %vm64, 1, 0
    %v69 = vsel %vm65, 1, 0
    %v70 = vsel %vm66, 1, 0
    %v71 = vcvt.s32.f32 %v67
    %v72 = vcvt.s32.f32 %v68
    %v73 = vcvt.s32.f32 %v69
    %v74 = vcvt.s32.f32 %v70
    %v75 = vpack.c.bf16 %v72, %v71
    %v76 = vpack.c.bf16 %v74, %v73
    %v77 = vlaneseq
    %v78 = vshrl.u32 %v77, 7
    %v79 = vsub.s32 1, %v78
    %v80 = vrot.slane %v39, %v79
    %vm81 = vcmp.eq.s32.totalorder %v53, %v80
    %vm82 = vcmp.eq.s32.totalorder %v54, %v80
    %vm83 = vcmp.eq.s32.totalorder %v55, %v80
    %vm84 = vcmp.eq.s32.totalorder %v56, %v80
    %vm85 = vcmp.eq.s32.totalorder %v57, %v80
    %vm86 = vcmp.eq.s32.totalorder %v58, %v80
    %v87 = vsel %vm81, 1, 0
    %v88 = vsel %vm82, 1, 0
    %v89 = vsel %vm83, 1, 0
    %v90 = vsel %vm84, 1, 0
    %v91 = vsel %vm85, 1, 0
    %v92 = vsel %vm86, 1, 0
    %v93 = vcvt.s32.f32 %v87
    %v94 = vcvt.s32.f32 %v88
    %v95 = vcvt.s32.f32 %v89
    %v96 = vcvt.s32.f32 %v90
    %v97 = vcvt.s32.f32 %v91
    %v98 = vcvt.s32.f32 %v92
    %v99 = vpack.c.bf16 %v94, %v93
    %v100 = vpack.c.bf16 %v96, %v95
    %v101 = vpack.c.bf16 %v98, %v97
    %v106 = vunpack.c.l.b16 %v44
    %v107 = vunpack.c.l.b16 %v45
    %v108 = vunpack.c.l.b16 %v46
    %v109 = vunpack.c.l.b16 %v47
    %v110 = vpack.c.b16 %v107, %v106
    %v111 = vpack.c.b16 %v109, %v108
    %vm112 = vcmask 392192
    %v114 = vsel %vm112, %v110, 0
    %v117 = vsel %vm112, %v111, 0
    %119 = vmatprep.subr.bf16.mxu0 0
    %120 = vmatpush1.bf16.msra.mxu0 %v99
    %121 = vmatprep.subr.bf16.mxu0 0
    %122 = vmatpush1.bf16.msra.mxu0 %v100
    %123 = vmatprep.subr.bf16.mxu0 0
    %124 = vmatpush1.bf16.msra.mxu0 %v101
    %125 = vmatprep.subr.bf16.mxu0 0
    %126 = vmatpush1.bf16.msra.mxu0 0
    %127 = vmatprep.subr.bf16.mxu0 0
    %128 = vmatpush1.bf16.msra.mxu0 0
    %129 = vmatprep.subr.bf16.mxu0 0
    %130 = vmatpush1.bf16.msra.mxu0 0
    %131 = vmatprep.subr.bf16.mxu0 0
    %132 = vmatpush1.bf16.msra.mxu0 0
    %133 = vmatprep.subr.bf16.mxu0 0
    %134 = vmatpush1.bf16.msra.mxu0 0
    %135 = vmatprep.subr.bf16.mxu0 0
    %136 = vmatpush1.bf16.msra.mxu0 0
    %137 = vmatprep.subr.bf16.mxu0 0
    %138 = vmatpush1.bf16.msra.mxu0 0
    %139 = vmatprep.subr.bf16.mxu0 0
    %140 = vmatpush1.bf16.msra.mxu0 0
    %141 = vmatprep.subr.bf16.mxu0 0
    %142 = vmatpush1.bf16.msra.mxu0 0
    %143 = vmatprep.subr.bf16.mxu0 0
    %144 = vmatpush1.bf16.msra.mxu0 0
    %145 = vmatprep.subr.bf16.mxu0 0
    %146 = vmatpush1.bf16.msra.mxu0 0
    %147 = vmatprep.subr.bf16.mxu0 0
    %148 = vmatpush1.bf16.msra.mxu0 0
    %149 = vmatprep.subr.bf16.mxu0 0
    %150 = vmatpush1.bf16.msra.mxu0 0
    %151 = vmatprep.mubr.bf16.mxu0 0
    %152 = vmatmul.mubr.bf16.gmra.mrb[0].mxu0 %v114
    %v153 = vpop.f32.mrb[0].mxu0
    %v154 = vadd.f32 0.0, %v153
    %v155 = vpop.f32.mrb[0].mxu0
    %v156 = vpop.f32.mrb[0].mxu0
    %v157 = vadd.f32 0.0, %v156
    %v158 = vpop.f32.mrb[0].mxu0
    %159 = vmatprep.mubr.bf16.mxu0 0
    %160 = vmatmul.mubr.bf16.gmra.mrb[0].mxu0 %v117
    %v161 = vpop.f32.mrb[0].mxu0
    %v162 = vadd.f32 0.0, %v161
    %v163 = vpop.f32.mrb[0].mxu0
    %v164 = vpop.f32.mrb[0].mxu0
    %v165 = vadd.f32 0.0, %v164
    %v166 = vpop.f32.mrb[0].mxu0
    %167 = vdwg.mxu0
    %v172 = vunpack.c.l.b16 %v40
    %v173 = vunpack.c.l.b16 %v41
    %v174 = vunpack.c.l.b16 %v42
    %v175 = vunpack.c.l.b16 %v43
    %v176 = vpack.c.b16 %v173, %v172
    %v177 = vpack.c.b16 %v175, %v174
    %vm178 = vcmask 261120
    %v180 = vsel %vm178, %v176, 0
    %v183 = vsel %vm178, %v177, 0
    %185 = vmatprep.subr.bf16.mxu0 0
    %186 = vmatpush1.bf16.msra.mxu0 %v75
    %187 = vmatprep.subr.bf16.mxu0 0
    %188 = vmatpush1.bf16.msra.mxu0 %v76
    %189 = vmatprep.subr.bf16.mxu0 0
    %190 = vmatpush1.bf16.msra.mxu0 0
    %191 = vmatprep.subr.bf16.mxu0 0
    %192 = vmatpush1.bf16.msra.mxu0 0
    %193 = vmatprep.subr.bf16.mxu0 0
    %194 = vmatpush1.bf16.msra.mxu0 0
    %195 = vmatprep.subr.bf16.mxu0 0
    %196 = vmatpush1.bf16.msra.mxu0 0
    %197 = vmatprep.subr.bf16.mxu0 0
    %198 = vmatpush1.bf16.msra.mxu0 0
    %199 = vmatprep.subr.bf16.mxu0 0
    %200 = vmatpush1.bf16.msra.mxu0 0
    %201 = vmatprep.subr.bf16.mxu0 0
    %202 = vmatpush1.bf16.msra.mxu0 0
    %203 = vmatprep.subr.bf16.mxu0 0
    %204 = vmatpush1.bf16.msra.mxu0 0
    %205 = vmatprep.subr.bf16.mxu0 0
    %206 = vmatpush1.bf16.msra.mxu0 0
    %207 = vmatprep.subr.bf16.mxu0 0
    %208 = vmatpush1.bf16.msra.mxu0 0
    %209 = vmatprep.subr.bf16.mxu0 0
    %210 = vmatpush1.bf16.msra.mxu0 0
    %211 = vmatprep.subr.bf16.mxu0 0
    %212 = vmatpush1.bf16.msra.mxu0 0
    %213 = vmatprep.subr.bf16.mxu0 0
    %214 = vmatpush1.bf16.msra.mxu0 0
    %215 = vmatprep.subr.bf16.mxu0 0
    %216 = vmatpush1.bf16.msra.mxu0 0
    %217 = vmatprep.mubr.bf16.mxu0 0
    %218 = vmatmul.mubr.bf16.gmra.mrb[0].mxu0 %v180
    %v219 = vpop.f32.mrb[0].mxu0
    %v220 = vadd.f32 %v154, %v219
    %v221 = vpop.f32.mrb[0].mxu0
    %v222 = vpop.f32.mrb[0].mxu0
    %v223 = vadd.f32 %v157, %v222
    %v224 = vpop.f32.mrb[0].mxu0
    %225 = vmatprep.mubr.bf16.mxu0 0
    %226 = vmatmul.mubr.bf16.gmra.mrb[0].mxu0 %v183
    %v227 = vpop.f32.mrb[0].mxu0
    %v228 = vadd.f32 %v162, %v227
    %v229 = vpop.f32.mrb[0].mxu0
    %v230 = vpop.f32.mrb[0].mxu0
    %v231 = vadd.f32 %v165, %v230
    %v232 = vpop.f32.mrb[0].mxu0
    %233 = vdwg.mxu0
    %235 = vset.pattern.permute.xlu0 0
    %236 = vperm.xlu0 %235, %v48
    %v237 = vpop.permute.xlu0 %236
    %240 = vset.pattern.permute.xlu0 0
    %241 = vperm.xlu0 %240, %v49
    %v242 = vpop.permute.xlu0 %241
    %245 = vset.pattern.permute.xlu0 0
    %246 = vperm.xlu0 %245, %v50
    %v247 = vpop.permute.xlu0 %246
    %250 = vset.pattern.permute.xlu0 0
    %251 = vperm.xlu0 %250, %v51
    %v252 = vpop.permute.xlu0 %251
    %v254 = vadd.f32 %v220, %v237
    %v255 = vadd.f32 %v223, %v242
    %v256 = vadd.f32 %v228, %v247
    %v257 = vadd.f32 %v231, %v252
    %v258 = vmax.f32 %v254, 0.0
    %v259 = vmax.f32 %v255, 0.0
    %v260 = vmax.f32 %v256, 0.0
    %v261 = vmax.f32 %v257, 0.0
    %v262 = vld [vmem:[%s4] sm:$0xf]
    %v263 = vld [vmem:[%s4 + $0x4] sm:$0xf]
    %v264 = vld [vmem:[%s5] sm:$0xff]
    %v265 = vld [vmem:[%s5 + $0x8] sm:$0xff]
    %v266 = vpack.c.bf16 %v259, %v258
    %v267 = vpack.c.bf16 %v261, %v260
    %269 = vset.pattern.permute.xlu0 0
    %270 = vperm.xlu0 %269, %v264
    %v271 = vpop.permute.xlu0 %270
    %274 = vset.pattern.permute.xlu0 0
    %275 = vperm.xlu0 %274, %v265
    %v276 = vpop.permute.xlu0 %275
    %v280 = vunpack.c.l.b16 %v262
    %v281 = vunpack.c.l.b16 %v263
    %v282 = vpack.c.b16 %v281, %v280
    %v284 = vsel %vm178, %v282, 0
    %286 = vmatprep.subr.bf16.mxu0 0
    %287 = vmatpush1.bf16.msra.mxu0 %v266
    %288 = vmatprep.subr.bf16.mxu0 0
    %289 = vmatpush1.bf16.msra.mxu0 %v267
    %290 = vmatprep.subr.bf16.mxu0 0
    %291 = vmatpush1.bf16.msra.mxu0 0
    %292 = vmatprep.subr.bf16.mxu0 0
    %293 = vmatpush1.bf16.msra.mxu0 0
    %294 = vmatprep.subr.bf16.mxu0 0
    %295 = vmatpush1.bf16.msra.mxu0 0
    %296 = vmatprep.subr.bf16.mxu0 0
    %297 = vmatpush1.bf16.msra.mxu0 0
    %298 = vmatprep.subr.bf16.mxu0 0
    %299 = vmatpush1.bf16.msra.mxu0 0
    %300 = vmatprep.subr.bf16.mxu0 0
    %301 = vmatpush1.bf16.msra.mxu0 0
    %302 = vmatprep.subr.bf16.mxu0 0
    %303 = vmatpush1.bf16.msra.mxu0 0
    %304 = vmatprep.subr.bf16.mxu0 0
    %305 = vmatpush1.bf16.msra.mxu0 0
    %306 = vmatprep.subr.bf16.mxu0 0
    %307 = vmatpush1.bf16.msra.mxu0 0
    %308 = vmatprep.subr.bf16.mxu0 0
    %309 = vmatpush1.bf16.msra.mxu0 0
    %310 = vmatprep.subr.bf16.mxu0 0
    %311 = vmatpush1.bf16.msra.mxu0 0
    %312 = vmatprep.subr.bf16.mxu0 0
    %313 = vmatpush1.bf16.msra.mxu0 0
    %314 = vmatprep.subr.bf16.mxu0 0
    %315 = vmatpush1.bf16.msra.mxu0 0
    %316 = vmatprep.subr.bf16.mxu0 0
    %317 = vmatpush1.bf16.msra.mxu0 0
    %318 = vmatprep.mubr.bf16.mxu0 0
    %319 = vmatmul.mubr.bf16.gmra.mrb[0].mxu0 %v284
    %v320 = vpop.f32.mrb[0].mxu0
    %v321 = vadd.f32 %v271, %v320
    %v322 = vpop.f32.mrb[0].mxu0
    %v323 = vpop.f32.mrb[0].mxu0
    %v324 = vadd.f32 %v276, %v323
    %v325 = vpop.f32.mrb[0].mxu0
    %326 = vdwg.mxu0
    %v327 = vmax.f32 %v321, 0.0
    %v328 = vmax.f32 %v324, 0.0
    %v329 = vld [vmem:[%s6] sm:$0xf]
    %v330 = vld [vmem:[%s7] sm:$0xff]
    %v331 = vpack.c.bf16 %v328, %v327
    %333 = vset.pattern.permute.xlu0 0
    %334 = vperm.xlu0 %333, %v330
    %v335 = vpop.permute.xlu0 %334
    %vm337 = vcmask 130048
    %v339 = vsel %vm337, %v329, 0
    %341 = vmatprep.subr.bf16.mxu0 0
    %342 = vmatpush1.bf16.msra.mxu0 %v331
    %343 = vmatprep.subr.bf16.mxu0 0
    %344 = vmatpush1.bf16.msra.mxu0 0
    %345 = vmatprep.subr.bf16.mxu0 0
    %346 = vmatpush1.bf16.msra.mxu0 0
    %347 = vmatprep.subr.bf16.mxu0 0
    %348 = vmatpush1.bf16.msra.mxu0 0
    %349 = vmatprep.subr.bf16.mxu0 0
    %350 = vmatpush1.bf16.msra.mxu0 0
    %351 = vmatprep.subr.bf16.mxu0 0
    %352 = vmatpush1.bf16.msra.mxu0 0
    %353 = vmatprep.subr.bf16.mxu0 0
    %354 = vmatpush1.bf16.msra.mxu0 0
    %355 = vmatprep.subr.bf16.mxu0 0
    %356 = vmatpush1.bf16.msra.mxu0 0
    %357 = vmatprep.subr.bf16.mxu0 0
    %358 = vmatpush1.bf16.msra.mxu0 0
    %359 = vmatprep.subr.bf16.mxu0 0
    %360 = vmatpush1.bf16.msra.mxu0 0
    %361 = vmatprep.subr.bf16.mxu0 0
    %362 = vmatpush1.bf16.msra.mxu0 0
    %363 = vmatprep.subr.bf16.mxu0 0
    %364 = vmatpush1.bf16.msra.mxu0 0
    %365 = vmatprep.subr.bf16.mxu0 0
    %366 = vmatpush1.bf16.msra.mxu0 0
    %367 = vmatprep.subr.bf16.mxu0 0
    %368 = vmatpush1.bf16.msra.mxu0 0
    %369 = vmatprep.subr.bf16.mxu0 0
    %370 = vmatpush1.bf16.msra.mxu0 0
    %371 = vmatprep.subr.bf16.mxu0 0
    %372 = vmatpush1.bf16.msra.mxu0 0
    %373 = vmatprep.mubr.bf16.mxu0 0
    %374 = vmatmul.mubr.bf16.gmra.mrb[0].mxu0 %v339
    %v375 = vpop.f32.mrb[0].mxu0
    %v376 = vadd.f32 %v335, %v375
    %v377 = vpop.f32.mrb[0].mxu0
    %v378 = vpop.f32.mrb[0].mxu0
    %v379 = vpop.f32.mrb[0].mxu0
    %380 = vdwg.mxu0
    %v381 = vmax.f32 %v376, 0.0
    %v382 = vld [vmem:[%s8] sm:$0xff]
    %v383 = vld [vmem:[#allocation2] sm:$0x1]
    %385 = vset.pattern.permute.xlu0 0
    %386 = vperm.xlu0 %385, %v382
    %v387 = vpop.permute.xlu0 %386
    %v389 = vmul.f32 %v381, %v387
    %v390 = vrot.slane %v389, 4
    %v391 = vadd.f32 %v389, %v390
    %v392 = vrot.slane %v391, 2
    %v393 = vadd.f32 %v391, %v392
    %v394 = vrot.slane %v393, 1
    %v395 = vadd.f32 %v393, %v394
    %397 = vset.pattern.permute.xlu0 0
    %398 = vperm.xlu0 %397, %v383
    %v399 = vpop.permute.xlu0 %398
    %v401 = vlaneseq
    %v402 = vshrl.u32 %v401, 7
    %v403 = vsub.s32 0, %v402
    %v404 = vrot.slane %v399, %v403
    %v405 = vadd.f32 %v395, %v404
    %v406 = vxor.u32 %v405, 2147483648
    %v407 = vmul.f32 %v406, 1.442695
    %v408 = vpow.pop %v407
    %v409 = vadd.f32 %v408, 1.0
    %v410 = vrcp.pop %v409
    %v411 = vmul.f32 1.0, %v410
    %412 = vst [vmem:[#allocation3] sm:$0x1] %v411
    // Predicated region
    $region42: #{tpu_custom_call.1} parent=1 // pred_check
      _
    $region43: #{tpu_custom_call.1} parent=1 // pred_check_branch
      %414 = sbr.rel (0) target = $region45
    $region44: #{tpu_custom_call.1} parent=1 // pred_region
      %s416 = ssub.s32 16, 16
      %417 = vsyncadd [#allocation4], %s416
      %s419 = sshll.u32 [#allocation3], 4
      %s420 = int_to_ptr.vmem [resolvable:$true] %s419
      %422 = dma.vmem_to_hbm [thread:$0]  %s420, 16, %s10, [#allocation4]
    $region45: #{tpu_custom_call.1} parent=1 // pred_fallthru
      _
    // Predicated region
    $region46: #{tpu_custom_call.1} parent=1 // pred_check
      _
    $region47: #{tpu_custom_call.1} parent=1 // pred_check_branch
      %424 = sbr.rel (0) target = $region49
    $region48: #{tpu_custom_call.1} parent=1 // pred_region
      %425 = dma.done [#allocation4], 16
    $region49: #{tpu_custom_call.1} parent=1 // pred_fallthru
      _
    %426 = vsyncpa [#allocation4], 1

</llo_original>
